<compile_context>
chip_gen: v7x
topology: tpu7x:2x2x1
jax: 0.10.0
libtpu: 0.0.40
codegen_flags: <defaults>
</compile_context>

<pallas_src>
import functools

import jax
import jax.numpy as jnp
from jax.experimental import pallas as pl
from jax.experimental.pallas import tpu as pltpu


# -----------------------------------------------------------------------------
# Kernel: per-block KL sum accumulated in a (1,1) f32 VMEM scratch; the final
# grid step scales by lambd_eff * 0.5 / B and writes the scalar output.
# -----------------------------------------------------------------------------
def _kl_div_kernel(mu_ref, lv_ref, out_ref, acc_ref, *, scale):
    i = pl.program_id(0)

    @pl.when(i == 0)
    def _():
        acc_ref[...] = jnp.zeros_like(acc_ref)

    mu = mu_ref[...]
    lv = lv_ref[...]
    # per-element KL term: mu^2 + exp(log_var) - log_var - 1
    elem = mu * mu + jnp.exp(lv) - lv - 1.0
    acc_ref[...] += jnp.sum(elem, axis=(0, 1), keepdims=True)

    @pl.when(i == pl.num_programs(0) - 1)
    def _():
        out_ref[...] = scale * acc_ref[...]


def kl_div_loss(mu, log_var, lambd=1.0):
    """Forward of KLDivLoss(lambd). Returns a scalar (0-d) f32 array."""
    assert mu.shape == log_var.shape and mu.ndim == 2
    B, D = mu.shape

    # `self.lambd = min(0.001, self.lambd)` is a host-side Python attribute
    # update; its effect on the returned value is the effective scale below.
    lambd_eff = min(0.001, float(lambd))
    # Fold 0.5 (KL factor), 1/B (batch mean) and lambd into one constant.
    scale = 0.5 * lambd_eff / float(B)

    # Single VMEM-resident block when the batch is small (the common case);
    # otherwise tile the batch in 256-row chunks and accumulate across steps.
    if B <= 256:
        tb = B
    else:
        tb = 256
        assert B % tb == 0, "batch must be a multiple of the 256-row tile"
    grid = (B // tb,)

    out = pl.pallas_call(
        functools.partial(_kl_div_kernel, scale=scale),
        out_shape=jax.ShapeDtypeStruct((1, 1), jnp.float32),
        grid=grid,
        in_specs=[
            pl.BlockSpec((tb, D), lambda i: (i, 0)),
            pl.BlockSpec((tb, D), lambda i: (i, 0)),
        ],
        out_specs=pl.BlockSpec((1, 1), lambda i: (0, 0)),
        scratch_shapes=[pltpu.VMEM((1, 1), jnp.float32)],
        compiler_params=pltpu.CompilerParams(
            dimension_semantics=("arbitrary",)),  # reduction axis
    )(mu, log_var)
    return out[0, 0]


# Pure-JAX reference for correctness checking.
def reference_kl(mu, log_var, lambd=1.0):
    loss = 0.5 * jnp.sum(-log_var - 1.0 + mu ** 2 + jnp.exp(log_var), axis=1)
    return min(0.001, float(lambd)) * jnp.mean(loss)


if __name__ == "__main__":
    root = jax.random.PRNGKey(0)
    kmu, klv = jax.random.split(root)

    # Small shapes consistent with the module: (batch, latent_dim).
    B, D = 16, 128
    mu = jax.random.normal(kmu, (B, D), dtype=jnp.float32)
    log_var = 0.1 * jax.random.normal(klv, (B, D), dtype=jnp.float32)

    loss = jax.jit(kl_div_loss)(mu, log_var)
    jax.block_until_ready(loss)

    assert loss.shape == (), f"expected scalar, got {loss.shape}"
    assert bool(jnp.isfinite(loss)), "non-finite loss"

    ref = jax.jit(reference_kl)(mu, log_var)
    assert bool(jnp.allclose(loss, ref, rtol=1e-5, atol=1e-6)), \
        f"mismatch: pallas={float(loss)} ref={float(ref)}"

    print("KERNEL_OK")
</pallas_src>

<mosaic_0001>
module attributes {stable_mosaic.version = 11 : i64} {
  func.func @_kl_div_kernel(%arg0: i32, %arg1: memref<16x128xf32, #tpu.memory_space<vmem>>, %arg2: memref<16x128xf32, #tpu.memory_space<vmem>>, %arg3: memref<1x1xf32, #tpu.memory_space<vmem>>, %arg4: memref<1x1xf32, #tpu.memory_space<vmem>>) attributes {dimension_semantics = [#tpu.dimension_semantics<arbitrary>], iteration_bounds = array<i64: 1>, scalar_prefetch = 0 : i64, scratch_operands = 1 : i64, tpu.core_type = #tpu.core_type<tc>, window_params = [{transform_indices = @transform_0, window_bounds = array<i64: 16, 128>}, {transform_indices = @transform_1, window_bounds = array<i64: 16, 128>}, {pipeline_mode = #tpu.pipeline_mode<synchronous>, transform_indices = @transform_2, window_bounds = array<i64: 1, 1>}]} {
    %c0_i32 = arith.constant 0 : i32
    %0 = arith.cmpi eq, %arg0, %c0_i32 : i32
    %1 = arith.extui %0 : i1 to i32
    %c0_i32_0 = arith.constant 0 : i32
    %2 = arith.cmpi ne, %1, %c0_i32_0 : i32
    scf.if %2 {
      %cst_11 = arith.constant 0.000000e+00 : f32
      %22 = vector.broadcast %cst_11 : f32 to vector<1x1xf32>
      %c0_12 = arith.constant 0 : index
      %c0_13 = arith.constant 0 : index
      %23 = vector.load %arg4[%c0_12, %c0_13] : memref<1x1xf32, #tpu.memory_space<vmem>>, vector<1x1xf32>
      tpu.vector_store %arg4[%c0_12, %c0_13], %22 {strides = array<i32>} : memref<1x1xf32, #tpu.memory_space<vmem>>, vector<1x1xf32>,
    } else {
    }
    %c0 = arith.constant 0 : index
    %c0_1 = arith.constant 0 : index
    %3 = vector.load %arg1[%c0, %c0_1] : memref<16x128xf32, #tpu.memory_space<vmem>>, vector<16x128xf32>
    %c0_2 = arith.constant 0 : index
    %c0_3 = arith.constant 0 : index
    %4 = vector.load %arg2[%c0_2, %c0_3] : memref<16x128xf32, #tpu.memory_space<vmem>>, vector<16x128xf32>
    %5 = arith.mulf %3, %3 : vector<16x128xf32>
    %6 = math.exp %4 : vector<16x128xf32>
    %7 = arith.addf %5, %6 : vector<16x128xf32>
    %8 = arith.subf %7, %4 : vector<16x128xf32>
    %cst = arith.constant 1.000000e+00 : f32
    %9 = vector.broadcast %cst : f32 to vector<16x128xf32>
    %10 = arith.subf %8, %9 : vector<16x128xf32>
    %c0_4 = arith.constant 0 : index
    %c0_5 = arith.constant 0 : index
    %11 = vector.load %arg4[%c0_4, %c0_5] : memref<1x1xf32, #tpu.memory_space<vmem>>, vector<1x1xf32>
    %12 = vector.shape_cast %10 : vector<16x128xf32> to vector<1x16x128xf32>
    %cst_6 = arith.constant dense<0.000000e+00> : vector<1xf32>
    %13 = vector.multi_reduction <add>, %12, %cst_6 [1, 2] : vector<1x16x128xf32> to vector<1xf32>
    %14 = vector.shape_cast %13 : vector<1xf32> to vector<1x1x1xf32>
    %15 = vector.extract %14[0, 0, 0] : f32 from vector<1x1x1xf32>
    %16 = vector.broadcast %15 : f32 to vector<1x1xf32>
    %17 = arith.addf %11, %16 : vector<1x1xf32>
    %c0_7 = arith.constant 0 : index
    %c0_8 = arith.constant 0 : index
    %18 = vector.load %arg4[%c0_7, %c0_8] : memref<1x1xf32, #tpu.memory_space<vmem>>, vector<1x1xf32>
    tpu.vector_store %arg4[%c0_7, %c0_8], %17 {strides = array<i32>} : memref<1x1xf32, #tpu.memory_space<vmem>>, vector<1x1xf32>,
    %c0_i32_9 = arith.constant 0 : i32
    %19 = arith.cmpi eq, %arg0, %c0_i32_9 : i32
    %20 = arith.extui %19 : i1 to i32
    %c0_i32_10 = arith.constant 0 : i32
    %21 = arith.cmpi ne, %20, %c0_i32_10 : i32
    scf.if %21 {
      %c0_11 = arith.constant 0 : index
      %c0_12 = arith.constant 0 : index
      %22 = vector.load %arg4[%c0_11, %c0_12] : memref<1x1xf32, #tpu.memory_space<vmem>>, vector<1x1xf32>
      %cst_13 = arith.constant 3.125000e-05 : f32
      %23 = vector.broadcast %cst_13 : f32 to vector<1x1xf32>
      %24 = arith.mulf %23, %22 : vector<1x1xf32>
      %c0_14 = arith.constant 0 : index
      %c0_15 = arith.constant 0 : index
      %25 = vector.load %arg3[%c0_14, %c0_15] : memref<1x1xf32, #tpu.memory_space<vmem>>, vector<1x1xf32>
      tpu.vector_store %arg3[%c0_14, %c0_15], %24 {strides = array<i32>} : memref<1x1xf32, #tpu.memory_space<vmem>>, vector<1x1xf32>,
    } else {
    }
    return
  }
  func.func @transform_0(%arg0: i32) -> (i32, i32) {
    %c0_i32 = arith.constant 0 : i32
    %c0_i32_0 = arith.constant 0 : i32
    return %arg0, %c0_i32 : i32, i32
  }
  func.func @transform_1(%arg0: i32) -> (i32, i32) {
    %c0_i32 = arith.constant 0 : i32
    %c0_i32_0 = arith.constant 0 : i32
    return %arg0, %c0_i32 : i32, i32
  }
  func.func @transform_2(%arg0: i32) -> (i32, i32) {
    %c0_i32 = arith.constant 0 : i32
    %c0_i32_0 = arith.constant 0 : i32
    %c0_i32_1 = arith.constant 0 : i32
    return %c0_i32, %c0_i32_0 : i32, i32
  }
}

</mosaic_0001>

<llo_original>
// kernel: kl_div_loss.1
$region0: #{kl_div_loss.1}
  #allocation0 [shape = 'u32[]', space=smem, size = 0x4, offset = 0x4, fixed_abs, tag = 'smem constant byte address 0x4 - core index']
  #allocation1 [shape = 'u32[144,128]{1,0:T(1,128)}', space=vmem, size = 0x12000, scoped, tag = 'internal scratch']
  #allocation2 [shape = 'f32[1,1]{1,0:T(1,128)}', space=vmem, size = 0x200, scoped, tag = 'scratch operand']
  %s0 = inlined_call_operand.hbm [shape: f32[16,128], index: 0, kind: input, shape index: {}]
  %s1 = inlined_call_operand.hbm [shape: f32[16,128], index: 1, kind: input, shape index: {}]
  %s2 = inlined_call_operand.hbm [shape: f32[1,1], index: 2, kind: output, shape index: {}]
  %s3 = sld [smem:[#allocation0]]
  $region34: #{kl_div_loss.1} parent=0
    _
  %s5 = ssub.s32 1, %s3
  %s6 = scalar_select 0, %s5, %s3
  $region1: #{kl_div_loss.1} parent=0
    #allocation3 [shape = 'u8[8192]{0}', space=vmem, size = 0x2000, scoped, tag = 'input window, operand 0, single buffered']
    #allocation4 [shape = 's32[1]{0}', space=sflag, size = 0x4, scoped, tag = 'scoped memory for kl_div_loss.1']
    #allocation5 [shape = 's32[1]{0}', space=sflag, size = 0x4, scoped, tag = 'scoped memory for kl_div_loss.1']
    #allocation6 [shape = 'u8[8192]{0}', space=vmem, size = 0x2000, scoped, tag = 'input window, operand 1, single buffered']
    #allocation7 [shape = 's32[1]{0}', space=sflag, size = 0x4, scoped, tag = 'scoped memory for kl_div_loss.1']
    #allocation8 [shape = 'u8[512]{0}', space=vmem, size = 0x400, scoped, tag = 'output window, operand 0, single buffered']
    %7 = vsyncpa [#allocation4], 0
    %8 = vsyncpa [#allocation7], 0
    %9 = vsyncpa [#allocation5], 0
    // Predicated region
    $region2: #{kl_div_loss.1} parent=1 // pred_check
      _
    $region3: #{kl_div_loss.1} parent=1 // pred_check_branch
      %11 = sbr.rel (0) target = $region5
    $region4: #{kl_div_loss.1} parent=1 // pred_region
      %s13 = ssub.s32 256, 256
      %14 = vsyncadd [#allocation4], %s13
      %s15 = sshll.u32 [#allocation3], 4
      %s16 = int_to_ptr.vmem [resolvable:$true] %s15
      %21 = dma.hbm_to_vmem [thread:$0]  %s0, 256, %s16, [#allocation4], 128, 128, 8
    $region5: #{kl_div_loss.1} parent=1 // pred_fallthru
      _
    // Predicated region
    $region6: #{kl_div_loss.1} parent=1 // pred_check
      _
    $region7: #{kl_div_loss.1} parent=1 // pred_check_branch
      %23 = sbr.rel (0) target = $region9
    $region8: #{kl_div_loss.1} parent=1 // pred_region
      %s25 = ssub.s32 256, 256
      %26 = vsyncadd [#allocation7], %s25
      %s27 = sshll.u32 [#allocation6], 4
      %s28 = int_to_ptr.vmem [resolvable:$true] %s27
      %33 = dma.hbm_to_vmem [thread:$0]  %s1, 256, %s28, [#allocation7], 128, 128, 8
    $region9: #{kl_div_loss.1} parent=1 // pred_fallthru
      _
    // Predicated region
    $region10: #{kl_div_loss.1} parent=1 // pred_check
      _
    $region11: #{kl_div_loss.1} parent=1 // pred_check_branch
      %35 = sbr.rel (0) target = $region13
    $region12: #{kl_div_loss.1} parent=1 // pred_region
      %36 = dma.done [#allocation4], 256
    $region13: #{kl_div_loss.1} parent=1 // pred_fallthru
      _
    // Predicated region
    $region14: #{kl_div_loss.1} parent=1 // pred_check
      _
    $region15: #{kl_div_loss.1} parent=1 // pred_check_branch
      %38 = sbr.rel (0) target = $region17
    $region16: #{kl_div_loss.1} parent=1 // pred_region
      %39 = dma.done [#allocation7], 256
    $region17: #{kl_div_loss.1} parent=1 // pred_fallthru
      _
    %p40 = scmp.eq.s32.totalorder 0, 0
    // Predicated region
    $region18: #{kl_div_loss.1} parent=1 // pred_check
      %p41 = pneg %p40
    $region19: #{kl_div_loss.1} parent=1 // pred_check_branch
      %43 = sbr.rel (%p41) target = $region21
    $region20: #{kl_div_loss.1} parent=1 // pred_region
      %vm44 = vcmask 0
      %45 = vst.msk [vmem:[#allocation2] sm:$0x1] %vm44, 0.0
    $region21: #{kl_div_loss.1} parent=1 // pred_fallthru
      _
    %v46 = vld [vmem:[#allocation3] sm:$0xff]
    %v47 = vld [vmem:[#allocation3 + $0x8] sm:$0xff]
    %v48 = vld [vmem:[#allocation6] sm:$0xff]
    %v49 = vld [vmem:[#allocation6 + $0x8] sm:$0xff]
    %v50 = vmul.f32 %v46, %v46
    %v51 = vmul.f32 %v47, %v47
    %v52 = vmul.f32 %v48, 1.442695
    %v53 = vpow.pop %v52
    %v54 = vmul.f32 %v49, 1.442695
    %v55 = vpow.pop %v54
    %v56 = vadd.f32 %v50, %v53
    %v57 = vadd.f32 %v51, %v55
    %v58 = vsub.f32 %v56, %v48
    %v59 = vsub.f32 %v57, %v49
    %v60 = vsub.f32 %v58, 1.0
    %v61 = vsub.f32 %v59, 1.0
    %v62 = vld [vmem:[#allocation2] sm:$0x1]
    %v63 = vadd.f32 %v60, %v61
    %64 = vadd.xlane.f32.xlu0 %v63
    %v65 = vpop.xlane.xlu0 %64
    %v66 = vrot.slane %v65, 4
    %v67 = vadd.f32 %v65, %v66
    %v68 = vrot.slane %v67, 2
    %v69 = vadd.f32 %v67, %v68
    %v70 = vrot.slane %v69, 1
    %v71 = vadd.f32 %v69, %v70
    %s72 = vtos %v71
    %v73 = vstv %s72
    %v74 = vadd.f32 %v62, %v73
    %vm75 = vcmask 0
    %76 = vst.msk [vmem:[#allocation2] sm:$0x1] %vm75, %v74
    // Predicated region
    $region22: #{kl_div_loss.1} parent=1 // pred_check
      %p77 = pneg %p40
    $region23: #{kl_div_loss.1} parent=1 // pred_check_branch
      %79 = sbr.rel (%p77) target = $region25
    $region24: #{kl_div_loss.1} parent=1 // pred_region
      %v80 = vld [vmem:[#allocation2] sm:$0x1]
      %v81 = vmul.f32 %v80, 3.125e-05
      %82 = vst.msk [vmem:[#allocation8] sm:$0x1] %vm75, %v81
    $region25: #{kl_div_loss.1} parent=1 // pred_fallthru
      _
    // Predicated region
    $region26: #{kl_div_loss.1} parent=1 // pred_check
      _
    $region27: #{kl_div_loss.1} parent=1 // pred_check_branch
      %84 = sbr.rel (0) target = $region29
    $region28: #{kl_div_loss.1} parent=1 // pred_region
      %s86 = ssub.s32 16, 16
      %87 = vsyncadd [#allocation5], %s86
      %s89 = sshll.u32 [#allocation8], 4
      %s90 = int_to_ptr.vmem [resolvable:$true] %s89
      %92 = dma.vmem_to_hbm [thread:$0]  %s90, 16, %s2, [#allocation5]
    $region29: #{kl_div_loss.1} parent=1 // pred_fallthru
      _
    // Predicated region
    $region30: #{kl_div_loss.1} parent=1 // pred_check
      _
    $region31: #{kl_div_loss.1} parent=1 // pred_check_branch
      %94 = sbr.rel (0) target = $region33
    $region32: #{kl_div_loss.1} parent=1 // pred_region
      %95 = dma.done [#allocation5], 16
    $region33: #{kl_div_loss.1} parent=1 // pred_fallthru
      _
    %96 = vsyncpa [#allocation4], 1
    %97 = vsyncpa [#allocation7], 1
    %98 = vsyncpa [#allocation5], 1

</llo_original>
